<compile_context>
chip_gen: v6e
topology: v6e:2x2x1
jax: 0.10.0
libtpu: 0.0.40
codegen_flags: <defaults>
</compile_context>

<pallas_src>
import jax
import jax.numpy as jnp
from jax import lax
from jax.experimental import pallas as pl
from jax.experimental.pallas import tpu as pltpu


def _round_up(x: int, m: int) -> int:
    return (x + m - 1) // m * m


def _make_gather_kernel(n_tables: int, rows_per_block: int, nsem: int):
    """Kernel: gather `rows_per_block` rows from each of `n_tables` HBM tables."""

    def kernel(ids_ref, *refs):
        hbm = refs[:n_tables]                       # HBM weight tables (ANY)
        outs = refs[n_tables:2 * n_tables]          # VMEM output blocks (R, d)
        bufs = refs[2 * n_tables:3 * n_tables]      # VMEM gather scratch (R, d)
        sem = refs[3 * n_tables]                    # DMA sems (n_tables, nsem)

        base = pl.program_id(0) * rows_per_block

        def start(r):
            row = ids_ref[base + r]
            slot = r % nsem
            for t in range(n_tables):
                pltpu.make_async_copy(
                    hbm[t].at[pl.ds(row, 1), :],
                    bufs[t].at[pl.ds(r, 1), :],
                    sem.at[t, slot],
                ).start()

        def wait(r):
            slot = r % nsem
            for t in range(n_tables):
                # Only dst shape + semaphore matter for the wait descriptor.
                pltpu.make_async_copy(
                    hbm[t].at[pl.ds(0, 1), :],
                    bufs[t].at[pl.ds(r, 1), :],
                    sem.at[t, slot],
                ).wait()

        window = min(nsem, rows_per_block)

        # Prime the window: `window` row-copies in flight per table.
        for r in range(window):
            start(r)

        # Steady state: retire the oldest copy, issue a new one.
        def steady(r, carry):
            wait(r - window)
            start(r)
            return carry

        lax.fori_loop(window, rows_per_block, steady, 0)

        # Drain remaining in-flight copies.
        def drain(r, carry):
            wait(r)
            return carry

        lax.fori_loop(rows_per_block - window, rows_per_block, drain, 0)

        # One dense, lane/sublane-aligned store per table (unmasked vst).
        for t in range(n_tables):
            outs[t][...] = bufs[t][...]

    return kernel


def _gather_call(ids, weights, rows_per_block, nsem):
    """One pallas_call gathering ids from every table in `weights`."""
    n = ids.shape[0]
    v, d = weights[0].shape
    n_tables = len(weights)

    n_pad = _round_up(n, rows_per_block)
    if n_pad != n:
        ids = jnp.pad(ids, (0, n_pad - n))          # pad with valid index 0
    grid = (n_pad // rows_per_block,)

    kernel = _make_gather_kernel(n_tables, rows_per_block, nsem)

    out_shape = tuple(
        jax.ShapeDtypeStruct((n_pad, d), w.dtype) for w in weights)
    out_specs = tuple(
        pl.BlockSpec((rows_per_block, d), lambda i, ids_sref: (i, 0))
        for _ in weights)
    in_specs = [pl.BlockSpec(memory_space=pl.ANY) for _ in weights]
    scratch_shapes = (
        [pltpu.VMEM((rows_per_block, d), w.dtype) for w in weights]
        + [pltpu.SemaphoreType.DMA((n_tables, nsem))]
    )

    bytes_accessed = (
        2 * n_pad * d * sum(int(w.dtype.itemsize) for w in weights)  # read+write
        + n_pad * 4                                                   # ids
    )

    outs = pl.pallas_call(
        kernel,
        out_shape=out_shape,
        grid_spec=pltpu.PrefetchScalarGridSpec(
            num_scalar_prefetch=1,
            grid=grid,
            in_specs=in_specs,
            out_specs=out_specs,
            scratch_shapes=scratch_shapes,
        ),
        compiler_params=pltpu.CompilerParams(
            # rows are independent -> lets v7x shard the grid over both TCs
            dimension_semantics=("parallel",),
        ),
        cost_estimate=pl.CostEstimate(
            flops=0, transcendentals=0, bytes_accessed=int(bytes_accessed)),
    )(ids, *weights)

    if not isinstance(outs, (tuple, list)):
        outs = (outs,)
    return tuple(o[:n] for o in outs)


# Cap rows per pallas_call so the scalar-prefetch ids array stays small in SMEM.
_MAX_ROWS_PER_CALL = 1 << 15


def embedding_lookup(ids_flat, weights, *, rows_per_block=None, nsem=8):
    """Gather rows `ids_flat` (int [N]) from each table in `weights` ([V, Dpad]).

    All tables must share shape/dtype, with Dpad a multiple of 128.
    Returns a tuple of [N, Dpad] arrays (one per table), gathered in a single
    fused Pallas call per chunk.
    """
    weights = tuple(weights)
    v, d = weights[0].shape
    assert d % 128 == 0, "embedding dim must be lane-padded to a multiple of 128"
    for w in weights:
        assert w.shape == (v, d) and w.dtype == weights[0].dtype

    # Clamp indices -> no out-of-bounds DMA (PyTorch would raise; we clamp).
    ids_flat = jnp.clip(jnp.asarray(ids_flat).astype(jnp.int32), 0, v - 1)
    n = ids_flat.shape[0]

    if rows_per_block is None:
        rows_per_block = min(256, _round_up(max(n, 1), 8))
    rows_per_block = _round_up(rows_per_block, 8)
    nsem = max(1, min(nsem, rows_per_block))

    if n <= _MAX_ROWS_PER_CALL:
        return _gather_call(ids_flat, weights, rows_per_block, nsem)

    parts = []
    for s in range(0, n, _MAX_ROWS_PER_CALL):
        parts.append(
            _gather_call(ids_flat[s:s + _MAX_ROWS_PER_CALL], weights,
                         rows_per_block, nsem))
    return tuple(
        jnp.concatenate([p[t] for p in parts], axis=0)
        for t in range(len(weights)))


class Item2Vec:
    """JAX/Pallas port of the PyTorch Item2Vec module (forward pass only)."""

    def __init__(self, padding_idx, vocab_size=20000, emb_size=300, *, key,
                 dtype=jnp.float32):
        self.name = "i2v"
        self.vocab_size = vocab_size
        self.emb_size = emb_size
        self.padding_idx = padding_idx
        self._emb_pad = _round_up(emb_size, 128)   # lane-padded embedding dim

        k_t, k_c = jax.random.split(key)
        lim = 0.5 / emb_size
        # t.cat([uniform(vocab_size - 1, emb), zeros(1, emb)]) -> last row zero
        t_body = jax.random.uniform(
            k_t, (vocab_size - 1, emb_size), dtype, minval=-lim, maxval=lim)
        c_body = jax.random.uniform(
            k_c, (vocab_size - 1, emb_size), dtype, minval=-lim, maxval=lim)
        zeros_row = jnp.zeros((1, emb_size), dtype)
        self.tvectors = jnp.concatenate([t_body, zeros_row], axis=0)
        self.cvectors = jnp.concatenate([c_body, zeros_row], axis=0)

        pad = self._emb_pad - emb_size
        self._tvectors_padded = jnp.pad(self.tvectors, ((0, 0), (0, pad)))
        self._cvectors_padded = jnp.pad(self.cvectors, ((0, 0), (0, pad)))

    # ------------------------------------------------------------------ #
    def _lookup(self, data, padded_weights):
        v = jnp.asarray(data).astype(jnp.int32)       # data.long()
        flat = v.reshape(-1)
        outs = embedding_lookup(flat, padded_weights)
        shape = v.shape + (self.emb_size,)
        return tuple(o[:, :self.emb_size].reshape(shape) for o in outs)

    def forward_t(self, data):
        return self._lookup(data, (self._tvectors_padded,))[0]

    def forward_c(self, data):
        return self._lookup(data, (self._cvectors_padded,))[0]

    def forward_tc(self, data):
        """Fused target+context lookup in a single pallas_call."""
        return self._lookup(data, (self._tvectors_padded,
                                   self._cvectors_padded))

    def forward(self, data):
        # TODO(synk): PyTorch forward() calls forward_i(), which is left
        # NotImplemented in the reference module; forward_t is used here as the
        # concrete target-embedding forward.
        return self.forward_t(data)


if __name__ == "__main__":
    key = jax.random.PRNGKey(0)
    k_param, k_idx = jax.random.split(key)

    vocab_size = 512
    emb_size = 120                # not a multiple of 128 -> exercises lane padding
    padding_idx = vocab_size - 1
    batch, seq = 2, 8

    model = Item2Vec(padding_idx, vocab_size=vocab_size, emb_size=emb_size,
                     key=k_param)

    # int indices, include the padding index to exercise the zero row
    data = jax.random.randint(k_idx, (batch, seq), 0, vocab_size, dtype=jnp.int32)
    data = data.at[0, 0].set(padding_idx)

    out_t = model.forward(data)
    out_c = model.forward_c(data)
    out_ft, out_fc = model.forward_tc(data)          # fused t+c path
    jax.block_until_ready((out_t, out_c, out_ft, out_fc))

    # sanity-check against plain JAX gather
    ref_t = jnp.take(model.tvectors, data, axis=0)
    ref_c = jnp.take(model.cvectors, data, axis=0)
    assert out_t.shape == (batch, seq, emb_size)
    assert out_c.shape == (batch, seq, emb_size)
    assert jnp.allclose(out_t, ref_t)
    assert jnp.allclose(out_c, ref_c)
    assert jnp.allclose(out_ft, ref_t)
    assert jnp.allclose(out_fc, ref_c)
    assert jnp.all(out_t[0, 0] == 0.0)               # padding row is all zeros

    print("KERNEL_OK")
</pallas_src>

<mosaic_0001>
module attributes {stable_mosaic.version = 11 : i64} {
  func.func @kernel(%arg0: i32, %arg1: memref<16xi32, #tpu.memory_space<smem>>, %arg2: memref<512x128xf32, #tpu.memory_space<any>>, %arg3: memref<16x128xf32, #tpu.memory_space<vmem>>, %arg4: memref<16x128xf32, #tpu.memory_space<vmem>>, %arg5: memref<1x8x!tpu.dma_semaphore, #tpu.memory_space<semaphore_mem>>) attributes {dimension_semantics = [#tpu.dimension_semantics<parallel>], iteration_bounds = array<i64: 1>, scalar_prefetch = 1 : i64, scratch_operands = 2 : i64, tpu.core_type = #tpu.core_type<tc>, window_params = [{}, {transform_indices = @transform_1, window_bounds = array<i64: 16, 128>}]} {
    %c16_i32 = arith.constant 16 : i32
    %0 = arith.muli %arg0, %c16_i32 : i32
    %c0_i32 = arith.constant 0 : i32
    %1 = arith.addi %0, %c0_i32 : i32
    %2 = arith.index_cast %1 : i32 to index
    %3 = memref.load %arg1[%2] : memref<16xi32, #tpu.memory_space<smem>>
    %c0_i32_0 = arith.constant 0 : i32
    %c0_i32_1 = arith.constant 0 : i32
    %c0_i32_2 = arith.constant 0 : i32
    %4 = tpu.memref_slice %arg2[%3, %c0_i32_2] : memref<512x128xf32, #tpu.memory_space<any>> -> memref<1x128xf32, #tpu.memory_space<any>>
    %c0_i32_3 = arith.constant 0 : i32
    %c0_i32_4 = arith.constant 0 : i32
    %5 = tpu.memref_slice %arg4[%c0_i32_3, %c0_i32_4] : memref<16x128xf32, #tpu.memory_space<vmem>> -> memref<1x128xf32, #tpu.memory_space<vmem>>
    %6 = tpu.memref_slice %arg5[%c0_i32_0, %c0_i32_1] : memref<1x8x!tpu.dma_semaphore, #tpu.memory_space<semaphore_mem>> -> memref<1x1x!tpu.dma_semaphore, #tpu.memory_space<semaphore_mem>>
    %7 = tpu.memref_squeeze %6 : memref<1x1x!tpu.dma_semaphore, #tpu.memory_space<semaphore_mem>> -> memref<!tpu.dma_semaphore, #tpu.memory_space<semaphore_mem>>
    tpu.enqueue_dma source(%4 : memref<1x128xf32, #tpu.memory_space<any>>) target(%5 : memref<1x128xf32, #tpu.memory_space<vmem>>) target_semaphore(%7 : memref<!tpu.dma_semaphore, #tpu.memory_space<semaphore_mem>>)
    %c1_i32 = arith.constant 1 : i32
    %8 = arith.addi %0, %c1_i32 : i32
    %9 = arith.index_cast %8 : i32 to index
    %10 = memref.load %arg1[%9] : memref<16xi32, #tpu.memory_space<smem>>
    %c0_i32_5 = arith.constant 0 : i32
    %c1_i32_6 = arith.constant 1 : i32
    %c0_i32_7 = arith.constant 0 : i32
    %11 = tpu.memref_slice %arg2[%10, %c0_i32_7] : memref<512x128xf32, #tpu.memory_space<any>> -> memref<1x128xf32, #tpu.memory_space<any>>
    %c1_i32_8 = arith.constant 1 : i32
    %c0_i32_9 = arith.constant 0 : i32
    %12 = tpu.memref_slice %arg4[%c1_i32_8, %c0_i32_9] : memref<16x128xf32, #tpu.memory_space<vmem>> -> memref<1x128xf32, #tpu.memory_space<vmem>>
    %13 = tpu.memref_slice %arg5[%c0_i32_5, %c1_i32_6] : memref<1x8x!tpu.dma_semaphore, #tpu.memory_space<semaphore_mem>> -> memref<1x1x!tpu.dma_semaphore, #tpu.memory_space<semaphore_mem>>
    %14 = tpu.memref_squeeze %13 : memref<1x1x!tpu.dma_semaphore, #tpu.memory_space<semaphore_mem>> -> memref<!tpu.dma_semaphore, #tpu.memory_space<semaphore_mem>>
    tpu.enqueue_dma source(%11 : memref<1x128xf32, #tpu.memory_space<any>>) target(%12 : memref<1x128xf32, #tpu.memory_space<vmem>>) target_semaphore(%14 : memref<!tpu.dma_semaphore, #tpu.memory_space<semaphore_mem>>)
    %c2_i32 = arith.constant 2 : i32
    %15 = arith.addi %0, %c2_i32 : i32
    %16 = arith.index_cast %15 : i32 to index
    %17 = memref.load %arg1[%16] : memref<16xi32, #tpu.memory_space<smem>>
    %c0_i32_10 = arith.constant 0 : i32
    %c2_i32_11 = arith.constant 2 : i32
    %c0_i32_12 = arith.constant 0 : i32
    %18 = tpu.memref_slice %arg2[%17, %c0_i32_12] : memref<512x128xf32, #tpu.memory_space<any>> -> memref<1x128xf32, #tpu.memory_space<any>>
    %c2_i32_13 = arith.constant 2 : i32
    %c0_i32_14 = arith.constant 0 : i32
    %19 = tpu.memref_slice %arg4[%c2_i32_13, %c0_i32_14] : memref<16x128xf32, #tpu.memory_space<vmem>> -> memref<1x128xf32, #tpu.memory_space<vmem>>
    %20 = tpu.memref_slice %arg5[%c0_i32_10, %c2_i32_11] : memref<1x8x!tpu.dma_semaphore, #tpu.memory_space<semaphore_mem>> -> memref<1x1x!tpu.dma_semaphore, #tpu.memory_space<semaphore_mem>>
    %21 = tpu.memref_squeeze %20 : memref<1x1x!tpu.dma_semaphore, #tpu.memory_space<semaphore_mem>> -> memref<!tpu.dma_semaphore, #tpu.memory_space<semaphore_mem>>
    tpu.enqueue_dma source(%18 : memref<1x128xf32, #tpu.memory_space<any>>) target(%19 : memref<1x128xf32, #tpu.memory_space<vmem>>) target_semaphore(%21 : memref<!tpu.dma_semaphore, #tpu.memory_space<semaphore_mem>>)
    %c3_i32 = arith.constant 3 : i32
    %22 = arith.addi %0, %c3_i32 : i32
    %23 = arith.index_cast %22 : i32 to index
    %24 = memref.load %arg1[%23] : memref<16xi32, #tpu.memory_space<smem>>
    %c0_i32_15 = arith.constant 0 : i32
    %c3_i32_16 = arith.constant 3 : i32
    %c0_i32_17 = arith.constant 0 : i32
    %25 = tpu.memref_slice %arg2[%24, %c0_i32_17] : memref<512x128xf32, #tpu.memory_space<any>> -> memref<1x128xf32, #tpu.memory_space<any>>
    %c3_i32_18 = arith.constant 3 : i32
    %c0_i32_19 = arith.constant 0 : i32
    %26 = tpu.memref_slice %arg4[%c3_i32_18, %c0_i32_19] : memref<16x128xf32, #tpu.memory_space<vmem>> -> memref<1x128xf32, #tpu.memory_space<vmem>>
    %27 = tpu.memref_slice %arg5[%c0_i32_15, %c3_i32_16] : memref<1x8x!tpu.dma_semaphore, #tpu.memory_space<semaphore_mem>> -> memref<1x1x!tpu.dma_semaphore, #tpu.memory_space<semaphore_mem>>
    %28 = tpu.memref_squeeze %27 : memref<1x1x!tpu.dma_semaphore, #tpu.memory_space<semaphore_mem>> -> memref<!tpu.dma_semaphore, #tpu.memory_space<semaphore_mem>>
    tpu.enqueue_dma source(%25 : memref<1x128xf32, #tpu.memory_space<any>>) target(%26 : memref<1x128xf32, #tpu.memory_space<vmem>>) target_semaphore(%28 : memref<!tpu.dma_semaphore, #tpu.memory_space<semaphore_mem>>)
    %c4_i32 = arith.constant 4 : i32
    %29 = arith.addi %0, %c4_i32 : i32
    %30 = arith.index_cast %29 : i32 to index
    %31 = memref.load %arg1[%30] : memref<16xi32, #tpu.memory_space<smem>>
    %c0_i32_20 = arith.constant 0 : i32
    %c4_i32_21 = arith.constant 4 : i32
    %c0_i32_22 = arith.constant 0 : i32
    %32 = tpu.memref_slice %arg2[%31, %c0_i32_22] : memref<512x128xf32, #tpu.memory_space<any>> -> memref<1x128xf32, #tpu.memory_space<any>>
    %c4_i32_23 = arith.constant 4 : i32
    %c0_i32_24 = arith.constant 0 : i32
    %33 = tpu.memref_slice %arg4[%c4_i32_23, %c0_i32_24] : memref<16x128xf32, #tpu.memory_space<vmem>> -> memref<1x128xf32, #tpu.memory_space<vmem>>
    %34 = tpu.memref_slice %arg5[%c0_i32_20, %c4_i32_21] : memref<1x8x!tpu.dma_semaphore, #tpu.memory_space<semaphore_mem>> -> memref<1x1x!tpu.dma_semaphore, #tpu.memory_space<semaphore_mem>>
    %35 = tpu.memref_squeeze %34 : memref<1x1x!tpu.dma_semaphore, #tpu.memory_space<semaphore_mem>> -> memref<!tpu.dma_semaphore, #tpu.memory_space<semaphore_mem>>
    tpu.enqueue_dma source(%32 : memref<1x128xf32, #tpu.memory_space<any>>) target(%33 : memref<1x128xf32, #tpu.memory_space<vmem>>) target_semaphore(%35 : memref<!tpu.dma_semaphore, #tpu.memory_space<semaphore_mem>>)
    %c5_i32 = arith.constant 5 : i32
    %36 = arith.addi %0, %c5_i32 : i32
    %37 = arith.index_cast %36 : i32 to index
    %38 = memref.load %arg1[%37] : memref<16xi32, #tpu.memory_space<smem>>
    %c0_i32_25 = arith.constant 0 : i32
    %c5_i32_26 = arith.constant 5 : i32
    %c0_i32_27 = arith.constant 0 : i32
    %39 = tpu.memref_slice %arg2[%38, %c0_i32_27] : memref<512x128xf32, #tpu.memory_space<any>> -> memref<1x128xf32, #tpu.memory_space<any>>
    %c5_i32_28 = arith.constant 5 : i32
    %c0_i32_29 = arith.constant 0 : i32
    %40 = tpu.memref_slice %arg4[%c5_i32_28, %c0_i32_29] : memref<16x128xf32, #tpu.memory_space<vmem>> -> memref<1x128xf32, #tpu.memory_space<vmem>>
    %41 = tpu.memref_slice %arg5[%c0_i32_25, %c5_i32_26] : memref<1x8x!tpu.dma_semaphore, #tpu.memory_space<semaphore_mem>> -> memref<1x1x!tpu.dma_semaphore, #tpu.memory_space<semaphore_mem>>
    %42 = tpu.memref_squeeze %41 : memref<1x1x!tpu.dma_semaphore, #tpu.memory_space<semaphore_mem>> -> memref<!tpu.dma_semaphore, #tpu.memory_space<semaphore_mem>>
    tpu.enqueue_dma source(%39 : memref<1x128xf32, #tpu.memory_space<any>>) target(%40 : memref<1x128xf32, #tpu.memory_space<vmem>>) target_semaphore(%42 : memref<!tpu.dma_semaphore, #tpu.memory_space<semaphore_mem>>)
    %c6_i32 = arith.constant 6 : i32
    %43 = arith.addi %0, %c6_i32 : i32
    %44 = arith.index_cast %43 : i32 to index
    %45 = memref.load %arg1[%44] : memref<16xi32, #tpu.memory_space<smem>>
    %c0_i32_30 = arith.constant 0 : i32
    %c6_i32_31 = arith.constant 6 : i32
    %c0_i32_32 = arith.constant 0 : i32
    %46 = tpu.memref_slice %arg2[%45, %c0_i32_32] : memref<512x128xf32, #tpu.memory_space<any>> -> memref<1x128xf32, #tpu.memory_space<any>>
    %c6_i32_33 = arith.constant 6 : i32
    %c0_i32_34 = arith.constant 0 : i32
    %47 = tpu.memref_slice %arg4[%c6_i32_33, %c0_i32_34] : memref<16x128xf32, #tpu.memory_space<vmem>> -> memref<1x128xf32, #tpu.memory_space<vmem>>
    %48 = tpu.memref_slice %arg5[%c0_i32_30, %c6_i32_31] : memref<1x8x!tpu.dma_semaphore, #tpu.memory_space<semaphore_mem>> -> memref<1x1x!tpu.dma_semaphore, #tpu.memory_space<semaphore_mem>>
    %49 = tpu.memref_squeeze %48 : memref<1x1x!tpu.dma_semaphore, #tpu.memory_space<semaphore_mem>> -> memref<!tpu.dma_semaphore, #tpu.memory_space<semaphore_mem>>
    tpu.enqueue_dma source(%46 : memref<1x128xf32, #tpu.memory_space<any>>) target(%47 : memref<1x128xf32, #tpu.memory_space<vmem>>) target_semaphore(%49 : memref<!tpu.dma_semaphore, #tpu.memory_space<semaphore_mem>>)
    %c7_i32 = arith.constant 7 : i32
    %50 = arith.addi %0, %c7_i32 : i32
    %51 = arith.index_cast %50 : i32 to index
    %52 = memref.load %arg1[%51] : memref<16xi32, #tpu.memory_space<smem>>
    %c0_i32_35 = arith.constant 0 : i32
    %c7_i32_36 = arith.constant 7 : i32
    %c0_i32_37 = arith.constant 0 : i32
    %53 = tpu.memref_slice %arg2[%52, %c0_i32_37] : memref<512x128xf32, #tpu.memory_space<any>> -> memref<1x128xf32, #tpu.memory_space<any>>
    %c7_i32_38 = arith.constant 7 : i32
    %c0_i32_39 = arith.constant 0 : i32
    %54 = tpu.memref_slice %arg4[%c7_i32_38, %c0_i32_39] : memref<16x128xf32, #tpu.memory_space<vmem>> -> memref<1x128xf32, #tpu.memory_space<vmem>>
    %55 = tpu.memref_slice %arg5[%c0_i32_35, %c7_i32_36] : memref<1x8x!tpu.dma_semaphore, #tpu.memory_space<semaphore_mem>> -> memref<1x1x!tpu.dma_semaphore, #tpu.memory_space<semaphore_mem>>
    %56 = tpu.memref_squeeze %55 : memref<1x1x!tpu.dma_semaphore, #tpu.memory_space<semaphore_mem>> -> memref<!tpu.dma_semaphore, #tpu.memory_space<semaphore_mem>>
    tpu.enqueue_dma source(%53 : memref<1x128xf32, #tpu.memory_space<any>>) target(%54 : memref<1x128xf32, #tpu.memory_space<vmem>>) target_semaphore(%56 : memref<!tpu.dma_semaphore, #tpu.memory_space<semaphore_mem>>)
    %c8_i32 = arith.constant 8 : i32
    %c8_i32_40 = arith.constant 8 : i32
    %57 = arith.addi %c8_i32, %c8_i32_40 : i32
    %c1_i32_41 = arith.constant 1 : i32
    scf.for %arg6 = %c8_i32 to %57 step %c1_i32_41  : i32 {
      %c8_i32_50 = arith.constant 8 : i32
      %61 = arith.subi %arg6, %c8_i32_50 : i32
      %c8_i32_51 = arith.constant 8 : i32
      %c0_i32_52 = arith.constant 0 : i32
      %62 = arith.cmpi eq, %c8_i32_51, %c0_i32_52 : i32
      %c1_i32_53 = arith.constant 1 : i32
      %63 = arith.select %62, %c1_i32_53, %c8_i32_51 : i32
      %64 = arith.remsi %61, %63 : i32
      %c0_i32_54 = arith.constant 0 : i32
      %65 = arith.cmpi ne, %64, %c0_i32_54 : i32
      %c0_i32_55 = arith.constant 0 : i32
      %66 = arith.cmpi slt, %64, %c0_i32_55 : i32
      %c0_i32_56 = arith.constant 0 : i32
      %67 = arith.cmpi slt, %63, %c0_i32_56 : i32
      %68 = arith.xori %66, %67 : i1
      %69 = arith.andi %68, %65 : i1
      %70 = arith.addi %64, %63 : i32
      %71 = arith.select %69, %70, %64 : i32
      %c0_i32_57 = arith.constant 0 : i32
      %c0_i32_58 = arith.constant 0 : i32
      %c0_i32_59 = arith.constant 0 : i32
      %72 = tpu.memref_slice %arg2[%c0_i32_58, %c0_i32_59] : memref<512x128xf32, #tpu.memory_space<any>> -> memref<1x128xf32, #tpu.memory_space<any>>
      %c0_i32_60 = arith.constant 0 : i32
      %73 = tpu.memref_slice %arg4[%61, %c0_i32_60] : memref<16x128xf32, #tpu.memory_space<vmem>> -> memref<1x128xf32, #tpu.memory_space<vmem>>
      %74 = tpu.memref_slice %arg5[%c0_i32_57, %71] : memref<1x8x!tpu.dma_semaphore, #tpu.memory_space<semaphore_mem>> -> memref<1x1x!tpu.dma_semaphore, #tpu.memory_space<semaphore_mem>>
      %75 = tpu.memref_squeeze %74 : memref<1x1x!tpu.dma_semaphore, #tpu.memory_space<semaphore_mem>> -> memref<!tpu.dma_semaphore, #tpu.memory_space<semaphore_mem>>
      tpu.wait_dma2 semaphore(%75 : memref<!tpu.dma_semaphore, #tpu.memory_space<semaphore_mem>>) src(%72 : memref<1x128xf32, #tpu.memory_space<any>>) dst(%73 : memref<1x128xf32, #tpu.memory_space<vmem>>)
      %76 = arith.addi %0, %arg6 : i32
      %77 = arith.index_cast %76 : i32 to index
      %78 = memref.load %arg1[%77] : memref<16xi32, #tpu.memory_space<smem>>
      %c8_i32_61 = arith.constant 8 : i32
      %c0_i32_62 = arith.constant 0 : i32
      %79 = arith.cmpi eq, %c8_i32_61, %c0_i32_62 : i32
      %c1_i32_63 = arith.constant 1 : i32
      %80 = arith.select %79, %c1_i32_63, %c8_i32_61 : i32
      %81 = arith.remsi %arg6, %80 : i32
      %c0_i32_64 = arith.constant 0 : i32
      %82 = arith.cmpi ne, %81, %c0_i32_64 : i32
      %c0_i32_65 = arith.constant 0 : i32
      %83 = arith.cmpi slt, %81, %c0_i32_65 : i32
      %c0_i32_66 = arith.constant 0 : i32
      %84 = arith.cmpi slt, %80, %c0_i32_66 : i32
      %85 = arith.xori %83, %84 : i1
      %86 = arith.andi %85, %82 : i1
      %87 = arith.addi %81, %80 : i32
      %88 = arith.select %86, %87, %81 : i32
      %c0_i32_67 = arith.constant 0 : i32
      %c0_i32_68 = arith.constant 0 : i32
      %89 = tpu.memref_slice %arg2[%78, %c0_i32_68] : memref<512x128xf32, #tpu.memory_space<any>> -> memref<1x128xf32, #tpu.memory_space<any>>
      %c0_i32_69 = arith.constant 0 : i32
      %90 = tpu.memref_slice %arg4[%arg6, %c0_i32_69] : memref<16x128xf32, #tpu.memory_space<vmem>> -> memref<1x128xf32, #tpu.memory_space<vmem>>
      %91 = tpu.memref_slice %arg5[%c0_i32_67, %88] : memref<1x8x!tpu.dma_semaphore, #tpu.memory_space<semaphore_mem>> -> memref<1x1x!tpu.dma_semaphore, #tpu.memory_space<semaphore_mem>>
      %92 = tpu.memref_squeeze %91 : memref<1x1x!tpu.dma_semaphore, #tpu.memory_space<semaphore_mem>> -> memref<!tpu.dma_semaphore, #tpu.memory_space<semaphore_mem>>
      tpu.enqueue_dma source(%89 : memref<1x128xf32, #tpu.memory_space<any>>) target(%90 : memref<1x128xf32, #tpu.memory_space<vmem>>) target_semaphore(%92 : memref<!tpu.dma_semaphore, #tpu.memory_space<semaphore_mem>>)
    }
    %c8_i32_42 = arith.constant 8 : i32
    %c8_i32_43 = arith.constant 8 : i32
    %c8_i32_44 = arith.constant 8 : i32
    %58 = arith.addi %c8_i32_43, %c8_i32_44 : i32
    %c1_i32_45 = arith.constant 1 : i32
    scf.for %arg6 = %c8_i32_43 to %58 step %c1_i32_45  : i32 {
      %c8_i32_50 = arith.constant 8 : i32
      %c0_i32_51 = arith.constant 0 : i32
      %61 = arith.cmpi eq, %c8_i32_50, %c0_i32_51 : i32
      %c1_i32_52 = arith.constant 1 : i32
      %62 = arith.select %61, %c1_i32_52, %c8_i32_50 : i32
      %63 = arith.remsi %arg6, %62 : i32
      %c0_i32_53 = arith.constant 0 : i32
      %64 = arith.cmpi ne, %63, %c0_i32_53 : i32
      %c0_i32_54 = arith.constant 0 : i32
      %65 = arith.cmpi slt, %63, %c0_i32_54 : i32
      %c0_i32_55 = arith.constant 0 : i32
      %66 = arith.cmpi slt, %62, %c0_i32_55 : i32
      %67 = arith.xori %65, %66 : i1
      %68 = arith.andi %67, %64 : i1
      %69 = arith.addi %63, %62 : i32
      %70 = arith.select %68, %69, %63 : i32
      %c0_i32_56 = arith.constant 0 : i32
      %c0_i32_57 = arith.constant 0 : i32
      %c0_i32_58 = arith.constant 0 : i32
      %71 = tpu.memref_slice %arg2[%c0_i32_57, %c0_i32_58] : memref<512x128xf32, #tpu.memory_space<any>> -> memref<1x128xf32, #tpu.memory_space<any>>
      %c0_i32_59 = arith.constant 0 : i32
      %72 = tpu.memref_slice %arg4[%arg6, %c0_i32_59] : memref<16x128xf32, #tpu.memory_space<vmem>> -> memref<1x128xf32, #tpu.memory_space<vmem>>
      %73 = tpu.memref_slice %arg5[%c0_i32_56, %70] : memref<1x8x!tpu.dma_semaphore, #tpu.memory_space<semaphore_mem>> -> memref<1x1x!tpu.dma_semaphore, #tpu.memory_space<semaphore_mem>>
      %74 = tpu.memref_squeeze %73 : memref<1x1x!tpu.dma_semaphore, #tpu.memory_space<semaphore_mem>> -> memref<!tpu.dma_semaphore, #tpu.memory_space<semaphore_mem>>
      tpu.wait_dma2 semaphore(%74 : memref<!tpu.dma_semaphore, #tpu.memory_space<semaphore_mem>>) src(%71 : memref<1x128xf32, #tpu.memory_space<any>>) dst(%72 : memref<1x128xf32, #tpu.memory_space<vmem>>)
    }
    %c8_i32_46 = arith.constant 8 : i32
    %c0 = arith.constant 0 : index
    %c0_47 = arith.constant 0 : index
    %59 = vector.load %arg4[%c0, %c0_47] : memref<16x128xf32, #tpu.memory_space<vmem>>, vector<16x128xf32>
    %c0_48 = arith.constant 0 : index
    %c0_49 = arith.constant 0 : index
    %60 = vector.load %arg3[%c0_48, %c0_49] : memref<16x128xf32, #tpu.memory_space<vmem>>, vector<16x128xf32>
    tpu.vector_store %arg3[%c0_48, %c0_49], %59 {strides = array<i32>} : memref<16x128xf32, #tpu.memory_space<vmem>>, vector<16x128xf32>,
    return
  }
  func.func @transform_1(%arg0: i32, %arg1: memref<16xi32, #tpu.memory_space<smem>>) -> (i32, i32) {
    %c0_i32 = arith.constant 0 : i32
    %c0_i32_0 = arith.constant 0 : i32
    return %arg0, %c0_i32 : i32, i32
  }
}

</mosaic_0001>

<llo_original>
// kernel: tpu_custom_call.1
$region0: #{tpu_custom_call.1}
  #allocation0 [shape = 'u32[]', space=smem, size = 0x4, offset = 0x4, fixed_abs, tag = 'smem constant byte address 0x4 - core index']
  #allocation1 [shape = 'u32[144,128]{1,0:T(1,128)}', space=vmem, size = 0x12000, scoped, tag = 'internal scratch']
  #allocation2 [shape = 'f32[16,128]{1,0:T(8,128)}', space=vmem, size = 0x2000, scoped, tag = 'scratch operand']
  #allocation3 [shape = 's32[8]{0}', space=sflag, size = 0x20, scoped, tag = 'scratch operand']
  #allocation4 [shape = 's32[1]{0}', space=sflag, size = 0x4, scoped, tag = 'scoped memory for tpu_custom_call.1']
  #allocation5 [shape = 'u8[512]{0}', space=smem, size = 0x200, scoped, tag = 'prefetched SMEM operand 0']
  #allocation8 [shape = 's32[]', space=sflag, size = 0x4, offset = 0, fixed_abs, tag = 'sflag constant byte address 0x0 - dummy sync flag']
  #allocation9 [shape = 's32[]', space=sflag, size = 0x4, offset = 0, fixed_abs, tag = 'sflag constant byte address 0x0 - dummy sync flag']
  #allocation10 [shape = 'u32[]', space=smem, size = 0x4, offset = 0x44, fixed_abs, tag = 'smem constant byte address 0x44 - assertion arg 0']
  #allocation11 [shape = 'u32[]', space=smem, size = 0x4, offset = 0x48, fixed_abs, tag = 'smem constant byte address 0x48 - assertion arg 1']
  #allocation12 [shape = 's32[]', space=sflag, size = 0x4, offset = 0, fixed_abs, tag = 'sflag constant byte address 0x0 - dummy sync flag']
  #allocation13 [shape = 's32[]', space=sflag, size = 0x4, offset = 0, fixed_abs, tag = 'sflag constant byte address 0x0 - dummy sync flag']
  #allocation14 [shape = 's32[]', space=sflag, size = 0x4, offset = 0, fixed_abs, tag = 'sflag constant byte address 0x0 - dummy sync flag']
  #allocation15 [shape = 's32[]', space=sflag, size = 0x4, offset = 0, fixed_abs, tag = 'sflag constant byte address 0x0 - dummy sync flag']
  #allocation16 [shape = 's32[]', space=sflag, size = 0x4, offset = 0, fixed_abs, tag = 'sflag constant byte address 0x0 - dummy sync flag']
  #allocation17 [shape = 's32[]', space=sflag, size = 0x4, offset = 0, fixed_abs, tag = 'sflag constant byte address 0x0 - dummy sync flag']
  #allocation18 [shape = 's32[]', space=sflag, size = 0x4, offset = 0, fixed_abs, tag = 'sflag constant byte address 0x0 - dummy sync flag']
  #allocation19 [shape = 's32[]', space=sflag, size = 0x4, offset = 0, fixed_abs, tag = 'sflag constant byte address 0x0 - dummy sync flag']
  #allocation20 [shape = 's32[]', space=sflag, size = 0x4, offset = 0, fixed_abs, tag = 'sflag constant byte address 0x0 - dummy sync flag']
  #allocation21 [shape = 's32[]', space=sflag, size = 0x4, offset = 0, fixed_abs, tag = 'sflag constant byte address 0x0 - dummy sync flag']
  #allocation22 [shape = 's32[]', space=sflag, size = 0x4, offset = 0, fixed_abs, tag = 'sflag constant byte address 0x0 - dummy sync flag']
  #allocation23 [shape = 's32[]', space=sflag, size = 0x4, offset = 0, fixed_abs, tag = 'sflag constant byte address 0x0 - dummy sync flag']
  #allocation24 [shape = 's32[]', space=sflag, size = 0x4, offset = 0, fixed_abs, tag = 'sflag constant byte address 0x0 - dummy sync flag']
  #allocation25 [shape = 's32[]', space=sflag, size = 0x4, offset = 0, fixed_abs, tag = 'sflag constant byte address 0x0 - dummy sync flag']
  #allocation26 [shape = 's32[]', space=sflag, size = 0x4, offset = 0, fixed_abs, tag = 'sflag constant byte address 0x0 - dummy sync flag']
  #allocation27 [shape = 's32[]', space=sflag, size = 0x4, offset = 0, fixed_abs, tag = 'sflag constant byte address 0x0 - dummy sync flag']
  %s0 = inlined_call_operand.hbm [shape: s32[16], index: 0, kind: input, shape index: {}]
  %s1 = inlined_call_operand.hbm [shape: f32[512,128], index: 1, kind: input, shape index: {}]
  %s2 = inlined_call_operand.hbm [shape: f32[16,128], index: 2, kind: output, shape index: {}]
  %s3 = sld [smem:[#allocation0]]
  $region60: #{tpu_custom_call.1} parent=0
    _
  %s5 = ssub.s32 1, %s3
  %s6 = scalar_select 0, %s5, %s3
  %8 = dma.hbm_to_smem %s0, 16, [#allocation5], [#allocation4]
  %9 = dma.done [#allocation4], 16
  %10 = sfence
  $region1: #{tpu_custom_call.1} parent=0
    #allocation6 [shape = 'u8[8192]{0}', space=vmem, size = 0x2000, scoped, tag = 'output window, operand 0, single buffered']
    #allocation7 [shape = 's32[1]{0}', space=sflag, size = 0x4, scoped, tag = 'scoped memory for tpu_custom_call.1']
    %11 = vsyncpa [#allocation7], 0
    %s12 = smul.u32 0, 16
    %s13 = sld [smem:[#allocation5 + %s12]]
    %s14 = smul.addr %s13, 16
    %s15 = scalar_lea.hbm %s1, %s14
    // Predicated region
    $region2: #{tpu_custom_call.1} parent=1 // pred_check
      _
    $region3: #{tpu_custom_call.1} parent=1 // pred_check_branch
      %17 = sbr.rel target = $region5
    $region4: #{tpu_custom_call.1} parent=1 // pred_region
      %18 = sst [smem:[#allocation10]] [#allocation9]
      %19 = sst [smem:[#allocation11]] [#allocation8]
    $region5: #{tpu_custom_call.1} parent=1 // pred_fallthru
      _
    %21 = shalt.err (0)
    %s23 = sshll.u32 [#allocation2], 4
    %s24 = int_to_ptr.vmem [resolvable:$true] %s23
    %26 = dma.hbm_to_vmem [thread:$0]  %s15, 16, %s24, [#allocation3]
    %s27 = sadd.s32 %s12, 1
    %s28 = sld [smem:[#allocation5 + %s27]]
    %s29 = smul.addr %s28, 16
    %s30 = scalar_lea.hbm %s1, %s29
    %s31 = scalar_lea.vmem [#allocation2], 1
    %s32 = scalar_lea.sflag [#allocation3], 1
    // Predicated region
    $region6: #{tpu_custom_call.1} parent=1 // pred_check
      _
    $region7: #{tpu_custom_call.1} parent=1 // pred_check_branch
      %34 = sbr.rel target = $region9
    $region8: #{tpu_custom_call.1} parent=1 // pred_region
      %35 = sst [smem:[#allocation10]] [#allocation13]
      %36 = sst [smem:[#allocation11]] [#allocation12]
    $region9: #{tpu_custom_call.1} parent=1 // pred_fallthru
      _
    %38 = shalt.err (0)
    %s40 = sshll.u32 %s31, 4
    %s41 = int_to_ptr.vmem [resolvable:$true] %s40
    %43 = dma.hbm_to_vmem [thread:$0]  %s30, 16, %s41, %s32
    %s44 = sadd.s32 %s12, 2
    %s45 = sld [smem:[#allocation5 + %s44]]
    %s46 = smul.addr %s45, 16
    %s47 = scalar_lea.hbm %s1, %s46
    %s48 = scalar_lea.vmem [#allocation2], 2
    %s49 = scalar_lea.sflag [#allocation3], 2
    // Predicated region
    $region10: #{tpu_custom_call.1} parent=1 // pred_check
      _
    $region11: #{tpu_custom_call.1} parent=1 // pred_check_branch
      %51 = sbr.rel target = $region13
    $region12: #{tpu_custom_call.1} parent=1 // pred_region
      %52 = sst [smem:[#allocation10]] [#allocation15]
      %53 = sst [smem:[#allocation11]] [#allocation14]
    $region13: #{tpu_custom_call.1} parent=1 // pred_fallthru
      _
    %55 = shalt.err (0)
    %s57 = sshll.u32 %s48, 4
    %s58 = int_to_ptr.vmem [resolvable:$true] %s57
    %60 = dma.hbm_to_vmem [thread:$0]  %s47, 16, %s58, %s49
    %s61 = sadd.s32 %s12, 3
    %s62 = sld [smem:[#allocation5 + %s61]]
    %s63 = smul.addr %s62, 16
    %s64 = scalar_lea.hbm %s1, %s63
    %s65 = scalar_lea.vmem [#allocation2], 3
    %s66 = scalar_lea.sflag [#allocation3], 3
    // Predicated region
    $region14: #{tpu_custom_call.1} parent=1 // pred_check
      _
    $region15: #{tpu_custom_call.1} parent=1 // pred_check_branch
      %68 = sbr.rel target = $region17
    $region16: #{tpu_custom_call.1} parent=1 // pred_region
      %69 = sst [smem:[#allocation10]] [#allocation17]
      %70 = sst [smem:[#allocation11]] [#allocation16]
    $region17: #{tpu_custom_call.1} parent=1 // pred_fallthru
      _
    %72 = shalt.err (0)
    %s74 = sshll.u32 %s65, 4
    %s75 = int_to_ptr.vmem [resolvable:$true] %s74
    %77 = dma.hbm_to_vmem [thread:$0]  %s64, 16, %s75, %s66
    %s78 = sadd.s32 %s12, 4
    %s79 = sld [smem:[#allocation5 + %s78]]
    %s80 = smul.addr %s79, 16
    %s81 = scalar_lea.hbm %s1, %s80
    %s82 = scalar_lea.vmem [#allocation2], 4
    %s83 = scalar_lea.sflag [#allocation3], 4
    // Predicated region
    $region18: #{tpu_custom_call.1} parent=1 // pred_check
      _
    $region19: #{tpu_custom_call.1} parent=1 // pred_check_branch
      %85 = sbr.rel target = $region21
    $region20: #{tpu_custom_call.1} parent=1 // pred_region
      %86 = sst [smem:[#allocation10]] [#allocation19]
      %87 = sst [smem:[#allocation11]] [#allocation18]
    $region21: #{tpu_custom_call.1} parent=1 // pred_fallthru
      _
    %89 = shalt.err (0)
    %s91 = sshll.u32 %s82, 4
    %s92 = int_to_ptr.vmem [resolvable:$true] %s91
    %94 = dma.hbm_to_vmem [thread:$0]  %s81, 16, %s92, %s83
    %s95 = sadd.s32 %s12, 5
    %s96 = sld [smem:[#allocation5 + %s95]]
    %s97 = smul.addr %s96, 16
    %s98 = scalar_lea.hbm %s1, %s97
    %s99 = scalar_lea.vmem [#allocation2], 5
    %s100 = scalar_lea.sflag [#allocation3], 5
    // Predicated region
    $region22: #{tpu_custom_call.1} parent=1 // pred_check
      _
    $region23: #{tpu_custom_call.1} parent=1 // pred_check_branch
      %102 = sbr.rel target = $region25
    $region24: #{tpu_custom_call.1} parent=1 // pred_region
      %103 = sst [smem:[#allocation10]] [#allocation21]
      %104 = sst [smem:[#allocation11]] [#allocation20]
    $region25: #{tpu_custom_call.1} parent=1 // pred_fallthru
      _
    %106 = shalt.err (0)
    %s108 = sshll.u32 %s99, 4
    %s109 = int_to_ptr.vmem [resolvable:$true] %s108
    %111 = dma.hbm_to_vmem [thread:$0]  %s98, 16, %s109, %s100
    %s112 = sadd.s32 %s12, 6
    %s113 = sld [smem:[#allocation5 + %s112]]
    %s114 = smul.addr %s113, 16
    %s115 = scalar_lea.hbm %s1, %s114
    %s116 = scalar_lea.vmem [#allocation2], 6
    %s117 = scalar_lea.sflag [#allocation3], 6
    // Predicated region
    $region26: #{tpu_custom_call.1} parent=1 // pred_check
      _
    $region27: #{tpu_custom_call.1} parent=1 // pred_check_branch
      %119 = sbr.rel target = $region29
    $region28: #{tpu_custom_call.1} parent=1 // pred_region
      %120 = sst [smem:[#allocation10]] [#allocation23]
      %121 = sst [smem:[#allocation11]] [#allocation22]
    $region29: #{tpu_custom_call.1} parent=1 // pred_fallthru
      _
    %123 = shalt.err (0)
    %s125 = sshll.u32 %s116, 4
    %s126 = int_to_ptr.vmem [resolvable:$true] %s125
    %128 = dma.hbm_to_vmem [thread:$0]  %s115, 16, %s126, %s117
    %s129 = sadd.s32 %s12, 7
    %s130 = sld [smem:[#allocation5 + %s129]]
    %s131 = smul.addr %s130, 16
    %s132 = scalar_lea.hbm %s1, %s131
    %s133 = scalar_lea.vmem [#allocation2], 7
    %s134 = scalar_lea.sflag [#allocation3], 7
    // Predicated region
    $region30: #{tpu_custom_call.1} parent=1 // pred_check
      _
    $region31: #{tpu_custom_call.1} parent=1 // pred_check_branch
      %136 = sbr.rel target = $region33
    $region32: #{tpu_custom_call.1} parent=1 // pred_region
      %137 = sst [smem:[#allocation10]] [#allocation25]
      %138 = sst [smem:[#allocation11]] [#allocation24]
    $region33: #{tpu_custom_call.1} parent=1 // pred_fallthru
      _
    %140 = shalt.err (0)
    %s142 = sshll.u32 %s133, 4
    %s143 = int_to_ptr.vmem [resolvable:$true] %s142
    %145 = dma.hbm_to_vmem [thread:$0]  %s132, 16, %s143, %s134
    loop: start=8, step=1, limit=16
    $region34: #{tpu_custom_call.1} parent=1 // loop_pre_header
      _
    $region35: #{tpu_custom_call.1} parent=1 // loop_header
      %s147 = sphi 8, %s151
      %p148 = scmp.ge.s32.totalorder %s147, 16
    $region36: #{tpu_custom_call.1} parent=1 // loop_header_branch
      %150 = sbr.rel (%p148) target = $region40
    $region37: #{tpu_custom_call.1} parent=1 // loop_body
      %s152 = ssub.s32 %s147, 8
      %p153 = scmp.lt.s32.totalorder %s152, 0
      %s154 = ssub.s32 0, %s152
      %s155 = scalar_select %p153, %s154, %s152
      %s156 = sand.u32 %s155, 7
      %s157 = ssub.s32 0, %s156
      %s158 = scalar_select %p153, %s157, %s156
      %p159 = scmp.ne.s32.totalorder %s158, 0
      %p160 = scmp.lt.s32.totalorder %s158, 0
      %p161 = pnand %p160, %p159
      %p162 = pneg %p161
      %s163 = sadd.s32 %s158, 8
      %s164 = scalar_select %p162, %s163, %s158
      %s165 = scalar_lea.sflag [#allocation3], %s164
      %s166 = smul.u32 1, 1
      %s167 = sshll.u32 %s166, 4
      %168 = dma.done %s165, %s167
      %s169 = sadd.s32 %s12, %s147
      %s170 = sld [smem:[#allocation5 + %s169]]
      %p171 = scmp.lt.s32.totalorder %s147, 0
      %s172 = ssub.s32 0, %s147
      %s173 = scalar_select %p171, %s172, %s147
      %s174 = sand.u32 %s173, 7
      %s175 = ssub.s32 0, %s174
      %s176 = scalar_select %p171, %s175, %s174
      %p177 = scmp.ne.s32.totalorder %s176, 0
      %p178 = scmp.lt.s32.totalorder %s176, 0
      %p179 = pnand %p178, %p177
      %p180 = pneg %p179
      %s181 = sadd.s32 %s176, 8
      %s182 = scalar_select %p180, %s181, %s176
      %s183 = smul.addr %s170, 16
      %s184 = scalar_lea.hbm %s1, %s183
      %s185 = scalar_lea.vmem [#allocation2], %s147
      %s186 = scalar_lea.sflag [#allocation3], %s182
      // Predicated region
      $region41: #{tpu_custom_call.1} parent=37 // pred_check
        _
      $region42: #{tpu_custom_call.1} parent=37 // pred_check_branch
        %188 = sbr.rel target = $region44
      $region43: #{tpu_custom_call.1} parent=37 // pred_region
        %189 = sst [smem:[#allocation10]] [#allocation27]
        %190 = sst [smem:[#allocation11]] [#allocation26]
      $region44: #{tpu_custom_call.1} parent=37 // pred_fallthru
        _
      %192 = shalt.err (0)
      %s194 = sshll.u32 %s185, 4
      %s195 = int_to_ptr.vmem [resolvable:$true] %s194
      %197 = dma.hbm_to_vmem [thread:$0]  %s184, 16, %s195, %s186
    $region38: #{tpu_custom_call.1} parent=1 // loop_footer
      %s151 = sadd.s32 1, %s147
    $region39: #{tpu_custom_call.1} parent=1 // loop_footer_branch
      %146 = sbr.rel target = $region35
    $region40: #{tpu_custom_call.1} parent=1 // loop_exit
      _
    loop: start=8, step=1, limit=16
    $region45: #{tpu_custom_call.1} parent=1 // loop_pre_header
      _
    $region46: #{tpu_custom_call.1} parent=1 // loop_header
      %s199 = sphi 8, %s203
      %p200 = scmp.ge.s32.totalorder %s199, 16
    $region47: #{tpu_custom_call.1} parent=1 // loop_header_branch
      %202 = sbr.rel (%p200) target = $region51
    $region48: #{tpu_custom_call.1} parent=1 // loop_body
      %p204 = scmp.lt.s32.totalorder %s199, 0
      %s205 = ssub.s32 0, %s199
      %s206 = scalar_select %p204, %s205, %s199
      %s207 = sand.u32 %s206, 7
      %s208 = ssub.s32 0, %s207
      %s209 = scalar_select %p204, %s208, %s207
      %p210 = scmp.ne.s32.totalorder %s209, 0
      %p211 = scmp.lt.s32.totalorder %s209, 0
      %p212 = pnand %p211, %p210
      %p213 = pneg %p212
      %s214 = sadd.s32 %s209, 8
      %s215 = scalar_select %p213, %s214, %s209
      %s216 = scalar_lea.sflag [#allocation3], %s215
      %s217 = smul.u32 1, 1
      %s218 = sshll.u32 %s217, 4
      %219 = dma.done %s216, %s218
    $region49: #{tpu_custom_call.1} parent=1 // loop_footer
      %s203 = sadd.s32 1, %s199
    $region50: #{tpu_custom_call.1} parent=1 // loop_footer_branch
      %198 = sbr.rel target = $region46
    $region51: #{tpu_custom_call.1} parent=1 // loop_exit
      _
    %v220 = vld [vmem:[#allocation2] sm:$0xff]
    %v221 = vld [vmem:[#allocation2 + $0x8] sm:$0xff]
    %222 = vst [vmem:[#allocation6] sm:$0xff] %v220
    %223 = vst [vmem:[#allocation6 + $0x8] sm:$0xff] %v221
    // Predicated region
    $region52: #{tpu_custom_call.1} parent=1 // pred_check
      _
    $region53: #{tpu_custom_call.1} parent=1 // pred_check_branch
      %225 = sbr.rel (0) target = $region55
    $region54: #{tpu_custom_call.1} parent=1 // pred_region
      %s227 = ssub.s32 256, 256
      %228 = vsyncadd [#allocation7], %s227
      %s229 = sshll.u32 [#allocation6], 4
      %s230 = int_to_ptr.vmem [resolvable:$true] %s229
      %235 = dma.vmem_to_hbm [thread:$0]  %s230, 256, %s2, [#allocation7], 128, 128, 8
    $region55: #{tpu_custom_call.1} parent=1 // pred_fallthru
      _
    // Predicated region
    $region56: #{tpu_custom_call.1} parent=1 // pred_check
      _
    $region57: #{tpu_custom_call.1} parent=1 // pred_check_branch
      %237 = sbr.rel (0) target = $region59
    $region58: #{tpu_custom_call.1} parent=1 // pred_region
      %238 = dma.done [#allocation7], 256
    $region59: #{tpu_custom_call.1} parent=1 // pred_fallthru
      _
    %239 = vsyncpa [#allocation7], 1
  %240 = vsyncmov [#allocation3]
  %s241 = vpop.sfrf %240
  %p242 = scmp.eq.s32.totalorder %s241, 0
  %p243 = pneg %p242
  %245 = shalt.err (%p243)
  %s246 = scalar_lea.sflag [#allocation3], 1
  %247 = vsyncmov %s246
  %s248 = vpop.sfrf %247
  %p249 = scmp.eq.s32.totalorder %s248, 0
  %p250 = pneg %p249
  %252 = shalt.err (%p250)
  %s253 = scalar_lea.sflag [#allocation3], 2
  %254 = vsyncmov %s253
  %s255 = vpop.sfrf %254
  %p256 = scmp.eq.s32.totalorder %s255, 0
  %p257 = pneg %p256
  %259 = shalt.err (%p257)
  %s260 = scalar_lea.sflag [#allocation3], 3
  %261 = vsyncmov %s260
  %s262 = vpop.sfrf %261
  %p263 = scmp.eq.s32.totalorder %s262, 0
  %p264 = pneg %p263
  %266 = shalt.err (%p264)
  %s267 = scalar_lea.sflag [#allocation3], 4
  %268 = vsyncmov %s267
  %s269 = vpop.sfrf %268
  %p270 = scmp.eq.s32.totalorder %s269, 0
  %p271 = pneg %p270
  %273 = shalt.err (%p271)
  %s274 = scalar_lea.sflag [#allocation3], 5
  %275 = vsyncmov %s274
  %s276 = vpop.sfrf %275
  %p277 = scmp.eq.s32.totalorder %s276, 0
  %p278 = pneg %p277
  %280 = shalt.err (%p278)
  %s281 = scalar_lea.sflag [#allocation3], 6
  %282 = vsyncmov %s281
  %s283 = vpop.sfrf %282
  %p284 = scmp.eq.s32.totalorder %s283, 0
  %p285 = pneg %p284
  %287 = shalt.err (%p285)
  %s288 = scalar_lea.sflag [#allocation3], 7
  %289 = vsyncmov %s288
  %s290 = vpop.sfrf %289
  %p291 = scmp.eq.s32.totalorder %s290, 0
  %p292 = pneg %p291
  %294 = shalt.err (%p292)

</llo_original>
